<compile_context>
chip_gen: v6e
topology: v6e:2x2x1
jax: 0.10.0
libtpu: 0.0.40
codegen_flags: <defaults>
</compile_context>

<pallas_src>
import jax
import jax.numpy as jnp
from jax.experimental import pallas as pl
from jax.experimental.pallas import tpu as pltpu

VOCAB = sorted(set('关 于 王 怡 宁 是 猪 这 件 事 我 有 几 点 想 说'.split()))
VOCAB_SIZE = len(VOCAB)          # 16
HIDDEN = 32
MLP = 16

# The packing scheme hard-codes 4-bit ids and 16-lane segments.
assert VOCAB_SIZE == 16, "kernel packing assumes a 16-entry vocab (4-bit ids)"

MAX_TILE_G = 2048                # packed rows per grid step (1-2 MB f32 out tile)
MIN_GRID_STEPS = 8               # keep several steps: v7x 2-TC sharding + overlap
SMALL_N = 1024                   # TODO(synk): re-tune gather/kernel crossover per TPU gen

HIGHEST = jax.lax.Precision.HIGHEST


def _round_up(a, b):
    return ((a + b - 1) // b) * b


def unigram_kernel(xp_ref, tab_hi_ref, tab_lo_ref, out_ref):
    """One tile of the fused UnigramNN forward.

    xp_ref:     (TILE_G, WORDS) int32  bit-packed ids, 8 per word, 4 bits each
    tab_hi_ref: (LANES, LANES)  bf16   block-diag fused table, high bf16 half
    tab_lo_ref: (LANES, LANES)  bf16   block-diag fused table, low  bf16 half
    out_ref:    (TILE_G, LANES) f32/bf16  packed logits: slot j -> lanes 16j..16j+15
    """
    tile_g, lanes = out_ref.shape
    words = xp_ref.shape[1]

    # lane -> (packed-token slot, vocab index within the 16-lane segment)
    lane = jax.lax.broadcasted_iota(jnp.int32, (tile_g, lanes), 1)
    slot = lane >> 4
    vid = lane & 15

    # Pick the 32-bit word holding this lane's token id (pure lane-broadcast +
    # select), then extract its nibble with a per-lane shift.  All VPU; no MXU
    # pass and no cross-lane data movement.
    if words == 1:
        word = jnp.broadcast_to(xp_ref[...], (tile_g, lanes))
    else:
        w0 = jnp.broadcast_to(xp_ref[:, 0:1], (tile_g, lanes))
        w1 = jnp.broadcast_to(xp_ref[:, 1:2], (tile_g, lanes))
        word = jnp.where(slot < 8, w0, w1)
    nib = jax.lax.shift_right_logical(word, (slot & 7) << 2) & 15

    # Packed one-hot is exactly 0/1 -> bf16 cast is lossless.  Two single-pass
    # bf16 MXU matmuls (hi + lo table halves) with f32 accumulation reproduce
    # the f32 table to ~2^-16 relative.
    one_hot = (nib == vid).astype(jnp.bfloat16)
    acc = jnp.dot(one_hot, tab_hi_ref[...], preferred_element_type=jnp.float32)
    acc = acc + jnp.dot(one_hot, tab_lo_ref[...], preferred_element_type=jnp.float32)
    out_ref[...] = acc.astype(out_ref.dtype)


def _fuse_params(params):
    """Collapse the 3 Linear layers into one (V, V) table (exact: no nonlinearity)."""
    wemb, bemb, wup, bup, wdn, bdn = params
    t_mat = jnp.dot(jnp.dot(wemb, wup, precision=HIGHEST), wdn, precision=HIGHEST)
    b_tot = jnp.dot(jnp.dot(bemb, wup, precision=HIGHEST) + bup, wdn,
                    precision=HIGHEST) + bdn                       # (1, V)
    return t_mat + b_tot                                           # (V, V): row t = logits(t)


def unigram_nn_forward(x, params, *, pack=8, out_dtype=jnp.float32,
                       force_pallas=False):
    """x: (N,) int token ids -> (N, VOCAB_SIZE) logits.

    pack=8  -> 128-lane packing (safe everywhere, matches v5e MXU tiles).
    pack=16 -> 256-lane packing (fills the 256-wide MXUs on v6e/v7x).
    out_dtype=bf16 is an opt-in bandwidth saver for v5e (breaks exact f32 parity).
    """
    assert pack in (8, 16), "pack must be 8 or 16"
    lanes = pack * VOCAB_SIZE
    assert lanes in (128, 256)
    words = pack // 8

    t_fused = _fuse_params(params)                                 # (16, 16)
    x = x.astype(jnp.int32)
    n = x.shape[0]

    if not force_pallas and n < SMALL_N:
        # Tiny batch: one gather is cheaper than any kernel launch.
        return jnp.take(t_fused, x, axis=0).astype(out_dtype)

    # ---------- Pallas path: lane-dense packed stream, tiled over N ----------
    g = pl.cdiv(n, pack)                                   # packed rows
    tile_g = min(MAX_TILE_G, max(8, _round_up(pl.cdiv(g, MIN_GRID_STEPS), 8)))
    g_pad = _round_up(g, tile_g)
    n_pad = g_pad * pack

    # Bit-pack ids host-side: 4 bits each, 8 per int32 word (0.5 B/token HBM).
    # Ids are masked to [0, 16); PyTorch's F.one_hot would raise on OOB ids.
    ids = (jnp.pad(x, (0, n_pad - n)) & (VOCAB_SIZE - 1)).reshape(g_pad, words, 8)
    x_packed = jnp.zeros((g_pad, words), jnp.int32)
    for j in range(8):
        x_packed = x_packed | (ids[:, :, j] << (4 * j))

    # Block-diagonal fused table (VMEM-resident across all grid steps), split
    # into an exact bf16 hi/lo pair: tab ~= f32(hi) + f32(lo) to ~2^-16 rel.
    tab = jnp.kron(jnp.eye(pack, dtype=jnp.float32), t_fused)       # (lanes, lanes)
    tab_hi = tab.astype(jnp.bfloat16)
    tab_lo = (tab - tab_hi.astype(jnp.float32)).astype(jnp.bfloat16)

    out_packed = pl.pallas_call(
        unigram_kernel,
        out_shape=jax.ShapeDtypeStruct((g_pad, lanes), out_dtype),
        grid=(g_pad // tile_g,),
        in_specs=[
            pl.BlockSpec((tile_g, words), lambda i: (i, 0)),        # streamed ids
            pl.BlockSpec((lanes, lanes), lambda i: (0, 0)),         # resident hi
            pl.BlockSpec((lanes, lanes), lambda i: (0, 0)),         # resident lo
        ],
        out_specs=pl.BlockSpec((tile_g, lanes), lambda i: (i, 0)),  # lane-dense out
        compiler_params=pltpu.CompilerParams(
            # 2-TC sharding on v7x (no-op on v5e/v6e); blocks are independent.
            dimension_semantics=("parallel",),
            # Budget @ tile_g=2048, lanes=256: 2x out (4 MB) + 2x padded id tile
            # (2 MB) + ~6 elementwise temporaries (~12 MB) + 2 tables (0.25 MB)
            # << 32 MiB, which also fits v7x's 64 MiB physical VMEM.
            vmem_limit_bytes=32 * 1024 * 1024,
        ),
    )(x_packed, tab_hi, tab_lo)

    # Free un-packing: (G, pack*16) row-major == (G*pack, 16) row-major.
    return out_packed.reshape(n_pad, VOCAB_SIZE)[:n]


def init_params(key):
    """Deterministic init matching nn.Linear shapes (stored transposed: (in, out))."""
    def linear(key, fan_in, fan_out):
        kw, kb = jax.random.split(key)
        bound = 1.0 / jnp.sqrt(fan_in)
        w = jax.random.uniform(kw, (fan_in, fan_out), jnp.float32, -bound, bound)
        b = jax.random.uniform(kb, (1, fan_out), jnp.float32, -bound, bound)
        return w, b

    k1, k2, k3 = jax.random.split(key, 3)
    wemb, bemb = linear(k1, VOCAB_SIZE, HIDDEN)   # nn.Linear(vocab_size, 32)
    wup, bup = linear(k2, HIDDEN, MLP)            # nn.Linear(32, 16)
    wdn, bdn = linear(k3, MLP, VOCAB_SIZE)        # nn.Linear(16, vocab_size)
    return wemb, bemb, wup, bup, wdn, bdn


def reference_forward(x, params):
    """Un-fused chain, exactly mirroring the PyTorch forward()."""
    wemb, bemb, wup, bup, wdn, bdn = params
    one_hot = jax.nn.one_hot(x, VOCAB_SIZE, dtype=jnp.float32)
    h = jnp.dot(one_hot, wemb, precision=HIGHEST) + bemb
    h = jnp.dot(h, wup, precision=HIGHEST) + bup
    return jnp.dot(h, wdn, precision=HIGHEST) + bdn


if __name__ == "__main__":
    key = jax.random.PRNGKey(0)
    kp, kx = jax.random.split(key)
    params = init_params(kp)

    # Small case (seq=8): force the Pallas path so the kernel itself runs.
    seq = 8
    x = jax.random.randint(kx, (seq,), 0, VOCAB_SIZE, dtype=jnp.int32)
    out = jax.block_until_ready(unigram_nn_forward(x, params, force_pallas=True))
    ref = reference_forward(x, params)
    assert out.shape == (seq, VOCAB_SIZE)
    assert jnp.allclose(out, ref, atol=1e-4, rtol=1e-4)

    # Auto-dispatch small path (plain-XLA gather) matches too.
    out_small = jax.block_until_ready(unigram_nn_forward(x, params))
    assert jnp.allclose(out_small, ref, atol=1e-4, rtol=1e-4)

    # Larger, non-multiple-of-pack case: padding + multi-step parallel grid.
    seq2 = 10_000
    x2 = jax.random.randint(jax.random.PRNGKey(1), (seq2,), 0, VOCAB_SIZE,
                            dtype=jnp.int32)
    ref2 = reference_forward(x2, params)

    out2 = jax.block_until_ready(
        unigram_nn_forward(x2, params, pack=8, force_pallas=True))
    assert out2.shape == (seq2, VOCAB_SIZE)
    assert jnp.allclose(out2, ref2, atol=1e-4, rtol=1e-4)

    # 256-lane packing variant (for v6e/v7x's 256-wide MXUs).
    out2_w = jax.block_until_ready(
        unigram_nn_forward(x2, params, pack=16, force_pallas=True))
    assert out2_w.shape == (seq2, VOCAB_SIZE)
    assert jnp.allclose(out2_w, ref2, atol=1e-4, rtol=1e-4)

    print("KERNEL_OK")
</pallas_src>

<mosaic_0001>
module attributes {stable_mosaic.version = 11 : i64} {
  func.func @unigram_kernel(%arg0: i32, %arg1: memref<8x1xi32, #tpu.memory_space<vmem>>, %arg2: memref<128x128xbf16, #tpu.memory_space<vmem>>, %arg3: memref<128x128xbf16, #tpu.memory_space<vmem>>, %arg4: memref<8x128xf32, #tpu.memory_space<vmem>>) attributes {dimension_semantics = [#tpu.dimension_semantics<parallel>], iteration_bounds = array<i64: 1>, scalar_prefetch = 0 : i64, scratch_operands = 0 : i64, tpu.core_type = #tpu.core_type<tc>, window_params = [{transform_indices = @transform_0, window_bounds = array<i64: 8, 1>}, {pipeline_mode = #tpu.pipeline_mode<synchronous>, transform_indices = @transform_1, window_bounds = array<i64: 128, 128>}, {pipeline_mode = #tpu.pipeline_mode<synchronous>, transform_indices = @transform_2, window_bounds = array<i64: 128, 128>}, {transform_indices = @transform_3, window_bounds = array<i64: 8, 128>}]} {
    %0 = tpu.iota {dimensions = array<i32: 1>} : vector<8x128xi32>
    %c4_i32 = arith.constant 4 : i32
    %1 = vector.broadcast %c4_i32 : i32 to vector<8x128xi32>
    %2 = arith.shrsi %0, %1 : vector<8x128xi32>
    %c15_i32 = arith.constant 15 : i32
    %3 = vector.broadcast %c15_i32 : i32 to vector<8x128xi32>
    %4 = arith.andi %0, %3 : vector<8x128xi32>
    %c0 = arith.constant 0 : index
    %c0_0 = arith.constant 0 : index
    %5 = vector.load %arg1[%c0, %c0_0] : memref<8x1xi32, #tpu.memory_space<vmem>>, vector<8x1xi32>
    %6 = vector.shape_cast %5 : vector<8x1xi32> to vector<8x1xi32>
    %7 = vector.broadcast %6 : vector<8x1xi32> to vector<8x128xi32>
    %c7_i32 = arith.constant 7 : i32
    %8 = vector.broadcast %c7_i32 : i32 to vector<8x128xi32>
    %9 = arith.andi %2, %8 : vector<8x128xi32>
    %c2_i32 = arith.constant 2 : i32
    %10 = vector.broadcast %c2_i32 : i32 to vector<8x128xi32>
    %11 = arith.shli %9, %10 : vector<8x128xi32>
    %12 = arith.shrui %7, %11 : vector<8x128xi32>
    %c15_i32_1 = arith.constant 15 : i32
    %13 = vector.broadcast %c15_i32_1 : i32 to vector<8x128xi32>
    %14 = arith.andi %12, %13 : vector<8x128xi32>
    %15 = arith.cmpi eq, %14, %4 : vector<8x128xi32>
    %16 = arith.extui %15 : vector<8x128xi1> to vector<8x128xi32>
    %17 = arith.sitofp %16 : vector<8x128xi32> to vector<8x128xf32>
    %18 = arith.truncf %17 : vector<8x128xf32> to vector<8x128xbf16>
    %c0_2 = arith.constant 0 : index
    %c0_3 = arith.constant 0 : index
    %19 = vector.load %arg2[%c0_2, %c0_3] : memref<128x128xbf16, #tpu.memory_space<vmem>>, vector<128x128xbf16>
    %cst = arith.constant dense<0.000000e+00> : vector<8x128xf32>
    %20 = tpu.matmul %18, %19, %cst {dimension_numbers = #tpu.dot_dimension_numbers<[1], [0], [0], [1], [0, 0, 1, 1], [], []>} : vector<8x128xbf16>, vector<128x128xbf16>, vector<8x128xf32> -> vector<8x128xf32>
    %c0_4 = arith.constant 0 : index
    %c0_5 = arith.constant 0 : index
    %21 = vector.load %arg3[%c0_4, %c0_5] : memref<128x128xbf16, #tpu.memory_space<vmem>>, vector<128x128xbf16>
    %cst_6 = arith.constant dense<0.000000e+00> : vector<8x128xf32>
    %22 = tpu.matmul %18, %21, %cst_6 {dimension_numbers = #tpu.dot_dimension_numbers<[1], [0], [0], [1], [0, 0, 1, 1], [], []>} : vector<8x128xbf16>, vector<128x128xbf16>, vector<8x128xf32> -> vector<8x128xf32>
    %23 = arith.addf %20, %22 : vector<8x128xf32>
    %c0_7 = arith.constant 0 : index
    %c0_8 = arith.constant 0 : index
    %24 = vector.load %arg4[%c0_7, %c0_8] : memref<8x128xf32, #tpu.memory_space<vmem>>, vector<8x128xf32>
    tpu.vector_store %arg4[%c0_7, %c0_8], %23 {strides = array<i32>} : memref<8x128xf32, #tpu.memory_space<vmem>>, vector<8x128xf32>,
    return
  }
  func.func @transform_0(%arg0: i32) -> (i32, i32) {
    %c0_i32 = arith.constant 0 : i32
    %c0_i32_0 = arith.constant 0 : i32
    return %arg0, %c0_i32 : i32, i32
  }
  func.func @transform_1(%arg0: i32) -> (i32, i32) {
    %c0_i32 = arith.constant 0 : i32
    %c0_i32_0 = arith.constant 0 : i32
    %c0_i32_1 = arith.constant 0 : i32
    return %c0_i32, %c0_i32_0 : i32, i32
  }
  func.func @transform_2(%arg0: i32) -> (i32, i32) {
    %c0_i32 = arith.constant 0 : i32
    %c0_i32_0 = arith.constant 0 : i32
    %c0_i32_1 = arith.constant 0 : i32
    return %c0_i32, %c0_i32_0 : i32, i32
  }
  func.func @transform_3(%arg0: i32) -> (i32, i32) {
    %c0_i32 = arith.constant 0 : i32
    %c0_i32_0 = arith.constant 0 : i32
    return %arg0, %c0_i32 : i32, i32
  }
}

</mosaic_0001>

<llo_original>
// kernel: tpu_custom_call.1
$region0: #{tpu_custom_call.1}
  #allocation0 [shape = 'u32[]', space=smem, size = 0x4, offset = 0x4, fixed_abs, tag = 'smem constant byte address 0x4 - core index']
  #allocation1 [shape = 'u32[144,128]{1,0:T(1,128)}', space=vmem, size = 0x12000, scoped, tag = 'internal scratch']
  %s0 = inlined_call_operand.vmem [shape: s32[8,1], index: 0, kind: input, shape index: {}]
  %s1 = inlined_call_operand.hbm [shape: bf16[128,128], index: 1, kind: input, shape index: {}]
  %s2 = inlined_call_operand.hbm [shape: bf16[128,128], index: 2, kind: input, shape index: {}]
  %s3 = inlined_call_operand.hbm [shape: f32[8,128], index: 3, kind: output, shape index: {}]
  %s4 = sld [smem:[#allocation0]]
  $region30: #{tpu_custom_call.1} parent=0
    _
  %s6 = ssub.s32 1, %s4
  %s7 = scalar_select 0, %s6, %s4
  $region1: #{tpu_custom_call.1} parent=0
    #allocation2 [shape = 'u8[32768]{0}', space=vmem, size = 0x8000, scoped, tag = 'input window, operand 1, single buffered']
    #allocation3 [shape = 's32[1]{0}', space=sflag, size = 0x4, scoped, tag = 'scoped memory for tpu_custom_call.1']
    #allocation4 [shape = 's32[1]{0}', space=sflag, size = 0x4, scoped, tag = 'scoped memory for tpu_custom_call.1']
    #allocation5 [shape = 'u8[32768]{0}', space=vmem, size = 0x8000, scoped, tag = 'input window, operand 2, single buffered']
    #allocation6 [shape = 's32[1]{0}', space=sflag, size = 0x4, scoped, tag = 'scoped memory for tpu_custom_call.1']
    #allocation7 [shape = 'u8[4096]{0}', space=vmem, size = 0x1000, scoped, tag = 'output window, operand 0, single buffered']
    %8 = vsyncpa [#allocation3], 0
    %9 = vsyncpa [#allocation6], 0
    %10 = vsyncpa [#allocation4], 0
    // Predicated region
    $region2: #{tpu_custom_call.1} parent=1 // pred_check
      _
    $region3: #{tpu_custom_call.1} parent=1 // pred_check_branch
      %12 = sbr.rel (0) target = $region5
    $region4: #{tpu_custom_call.1} parent=1 // pred_region
      _
    $region5: #{tpu_custom_call.1} parent=1 // pred_fallthru
      _
    // Predicated region
    $region6: #{tpu_custom_call.1} parent=1 // pred_check
      _
    $region7: #{tpu_custom_call.1} parent=1 // pred_check_branch
      %14 = sbr.rel (0) target = $region9
    $region8: #{tpu_custom_call.1} parent=1 // pred_region
      %s16 = ssub.s32 1024, 1024
      %17 = vsyncadd [#allocation3], %s16
      %s18 = sshll.u32 [#allocation2], 4
      %s19 = int_to_ptr.vmem [resolvable:$true] %s18
      %24 = dma.hbm_to_vmem [thread:$0]  %s1, 1024, %s19, [#allocation3], 64, 64, 4
    $region9: #{tpu_custom_call.1} parent=1 // pred_fallthru
      _
    // Predicated region
    $region10: #{tpu_custom_call.1} parent=1 // pred_check
      _
    $region11: #{tpu_custom_call.1} parent=1 // pred_check_branch
      %26 = sbr.rel (0) target = $region13
    $region12: #{tpu_custom_call.1} parent=1 // pred_region
      %s28 = ssub.s32 1024, 1024
      %29 = vsyncadd [#allocation6], %s28
      %s30 = sshll.u32 [#allocation5], 4
      %s31 = int_to_ptr.vmem [resolvable:$true] %s30
      %36 = dma.hbm_to_vmem [thread:$0]  %s2, 1024, %s31, [#allocation6], 64, 64, 4
    $region13: #{tpu_custom_call.1} parent=1 // pred_fallthru
      _
    // Predicated region
    $region14: #{tpu_custom_call.1} parent=1 // pred_check
      _
    $region15: #{tpu_custom_call.1} parent=1 // pred_check_branch
      %38 = sbr.rel (0) target = $region17
    $region16: #{tpu_custom_call.1} parent=1 // pred_region
      %39 = dma.done [#allocation3], 1024
    $region17: #{tpu_custom_call.1} parent=1 // pred_fallthru
      _
    // Predicated region
    $region18: #{tpu_custom_call.1} parent=1 // pred_check
      _
    $region19: #{tpu_custom_call.1} parent=1 // pred_check_branch
      %41 = sbr.rel (0) target = $region21
    $region20: #{tpu_custom_call.1} parent=1 // pred_region
      %42 = dma.done [#allocation6], 1024
    $region21: #{tpu_custom_call.1} parent=1 // pred_fallthru
      _
    %v44 = vlaneseq
    %v45 = vand.u32 %v44, 127
    %v46 = vshra.s32 %v45, 4
    %v47 = vand.u32 %v45, 15
    %v48 = vld [vmem:[%s0] sm:$0xff]
    %49 = vset.pattern.permute.xlu0 0
    %50 = vperm.xlu0 %49, %v48
    %v51 = vpop.permute.xlu0 %50
    %v52 = vand.u32 %v46, 7
    %v53 = vshll.u32 %v52, 2
    %v54 = vshrl.u32 %v51, %v53
    %v55 = vand.u32 %v54, 15
    %vm56 = vcmp.eq.s32.totalorder %v55, %v47
    %v57 = vsel %vm56, 1, 0
    %v58 = vcvt.s32.f32 %v57
    %v59 = vpack.c.bf16 %v58, %v58
    %v60 = vld [vmem:[#allocation2] sm:$0xf]
    %v61 = vld [vmem:[#allocation2 + $0x4] sm:$0xf]
    %v62 = vld [vmem:[#allocation2 + $0x8] sm:$0xf]
    %v63 = vld [vmem:[#allocation2 + $0xc] sm:$0xf]
    %v64 = vld [vmem:[#allocation2 + $0x10] sm:$0xf]
    %v65 = vld [vmem:[#allocation2 + $0x14] sm:$0xf]
    %v66 = vld [vmem:[#allocation2 + $0x18] sm:$0xf]
    %v67 = vld [vmem:[#allocation2 + $0x1c] sm:$0xf]
    %v68 = vld [vmem:[#allocation2 + $0x20] sm:$0xf]
    %v69 = vld [vmem:[#allocation2 + $0x24] sm:$0xf]
    %v70 = vld [vmem:[#allocation2 + $0x28] sm:$0xf]
    %v71 = vld [vmem:[#allocation2 + $0x2c] sm:$0xf]
    %v72 = vld [vmem:[#allocation2 + $0x30] sm:$0xf]
    %v73 = vld [vmem:[#allocation2 + $0x34] sm:$0xf]
    %v74 = vld [vmem:[#allocation2 + $0x38] sm:$0xf]
    %v75 = vld [vmem:[#allocation2 + $0x3c] sm:$0xf]
    %v76 = vld [vmem:[#allocation5] sm:$0xf]
    %v77 = vld [vmem:[#allocation5 + $0x4] sm:$0xf]
    %v78 = vld [vmem:[#allocation5 + $0x8] sm:$0xf]
    %v79 = vld [vmem:[#allocation5 + $0xc] sm:$0xf]
    %v80 = vld [vmem:[#allocation5 + $0x10] sm:$0xf]
    %v81 = vld [vmem:[#allocation5 + $0x14] sm:$0xf]
    %v82 = vld [vmem:[#allocation5 + $0x18] sm:$0xf]
    %v83 = vld [vmem:[#allocation5 + $0x1c] sm:$0xf]
    %v84 = vld [vmem:[#allocation5 + $0x20] sm:$0xf]
    %v85 = vld [vmem:[#allocation5 + $0x24] sm:$0xf]
    %v86 = vld [vmem:[#allocation5 + $0x28] sm:$0xf]
    %v87 = vld [vmem:[#allocation5 + $0x2c] sm:$0xf]
    %v88 = vld [vmem:[#allocation5 + $0x30] sm:$0xf]
    %v89 = vld [vmem:[#allocation5 + $0x34] sm:$0xf]
    %v90 = vld [vmem:[#allocation5 + $0x38] sm:$0xf]
    %v91 = vld [vmem:[#allocation5 + $0x3c] sm:$0xf]
    %v108 = vunpack.c.l.b16 %v76
    %v109 = vunpack.c.l.b16 %v77
    %v110 = vunpack.c.l.b16 %v78
    %v111 = vunpack.c.l.b16 %v79
    %v112 = vunpack.c.l.b16 %v80
    %v113 = vunpack.c.l.b16 %v81
    %v114 = vunpack.c.l.b16 %v82
    %v115 = vunpack.c.l.b16 %v83
    %v116 = vunpack.c.l.b16 %v84
    %v117 = vunpack.c.l.b16 %v85
    %v118 = vunpack.c.l.b16 %v86
    %v119 = vunpack.c.l.b16 %v87
    %v120 = vunpack.c.l.b16 %v88
    %v121 = vunpack.c.l.b16 %v89
    %v122 = vunpack.c.l.b16 %v90
    %v123 = vunpack.c.l.b16 %v91
    %v124 = vpack.c.b16 %v109, %v108
    %v125 = vpack.c.b16 %v111, %v110
    %v126 = vpack.c.b16 %v113, %v112
    %v127 = vpack.c.b16 %v115, %v114
    %v128 = vpack.c.b16 %v117, %v116
    %v129 = vpack.c.b16 %v119, %v118
    %v130 = vpack.c.b16 %v121, %v120
    %v131 = vpack.c.b16 %v123, %v122
    %140 = vmatprep.subr.bf16.mxu0 0
    %141 = vmatpush1.bf16.msra.mxu0 %v131
    %142 = vmatprep.subr.bf16.mxu0 0
    %143 = vmatpush1.bf16.msra.mxu0 %v130
    %144 = vmatprep.subr.bf16.mxu0 0
    %145 = vmatpush1.bf16.msra.mxu0 %v129
    %146 = vmatprep.subr.bf16.mxu0 0
    %147 = vmatpush1.bf16.msra.mxu0 %v128
    %148 = vmatprep.subr.bf16.mxu0 0
    %149 = vmatpush1.bf16.msra.mxu0 %v127
    %150 = vmatprep.subr.bf16.mxu0 0
    %151 = vmatpush1.bf16.msra.mxu0 %v126
    %152 = vmatprep.subr.bf16.mxu0 0
    %153 = vmatpush1.bf16.msra.mxu0 %v125
    %154 = vmatprep.subr.bf16.mxu0 0
    %155 = vmatpush1.bf16.msra.mxu0 %v124
    %156 = vmatprep.subr.bf16.mxu0 0
    %157 = vmatpush2.bf16.msra.mxu0 0
    %158 = vmatprep.subr.bf16.mxu0 0
    %159 = vmatpush2.bf16.msra.mxu0 0
    %160 = vmatprep.subr.bf16.mxu0 0
    %161 = vmatpush2.bf16.msra.mxu0 0
    %162 = vmatprep.subr.bf16.mxu0 0
    %163 = vmatpush2.bf16.msra.mxu0 0
    %164 = vmatprep.subr.bf16.mxu0 0
    %165 = vmatpush2.bf16.msra.mxu0 0
    %166 = vmatprep.subr.bf16.mxu0 0
    %167 = vmatpush2.bf16.msra.mxu0 0
    %168 = vmatprep.subr.bf16.mxu0 0
    %169 = vmatpush2.bf16.msra.mxu0 0
    %170 = vmatprep.subr.bf16.mxu0 0
    %171 = vmatpush2.bf16.msra.mxu0 0
    %172 = vmatprep.mubr.bf16.mxu0 0
    %173 = vmatmul.mubr.bf16.gmra.mxu0 %v59
    %v174 = vpop.f32.mrf.mxu0
    %v175 = vadd.f32 0.0, %v174
    %v176 = vpop.f32.mrf.mxu0
    %v177 = vpop.f32.mrf.mxu0
    %v178 = vpop.f32.mrf.mxu0
    %179 = vdwg.mxu0
    %v196 = vunpack.c.l.b16 %v60
    %v197 = vunpack.c.l.b16 %v61
    %v198 = vunpack.c.l.b16 %v62
    %v199 = vunpack.c.l.b16 %v63
    %v200 = vunpack.c.l.b16 %v64
    %v201 = vunpack.c.l.b16 %v65
    %v202 = vunpack.c.l.b16 %v66
    %v203 = vunpack.c.l.b16 %v67
    %v204 = vunpack.c.l.b16 %v68
    %v205 = vunpack.c.l.b16 %v69
    %v206 = vunpack.c.l.b16 %v70
    %v207 = vunpack.c.l.b16 %v71
    %v208 = vunpack.c.l.b16 %v72
    %v209 = vunpack.c.l.b16 %v73
    %v210 = vunpack.c.l.b16 %v74
    %v211 = vunpack.c.l.b16 %v75
    %v212 = vpack.c.b16 %v197, %v196
    %v213 = vpack.c.b16 %v199, %v198
    %v214 = vpack.c.b16 %v201, %v200
    %v215 = vpack.c.b16 %v203, %v202
    %v216 = vpack.c.b16 %v205, %v204
    %v217 = vpack.c.b16 %v207, %v206
    %v218 = vpack.c.b16 %v209, %v208
    %v219 = vpack.c.b16 %v211, %v210
    %228 = vmatprep.subr.bf16.mxu0 0
    %229 = vmatpush1.bf16.msra.mxu0 %v219
    %230 = vmatprep.subr.bf16.mxu0 0
    %231 = vmatpush1.bf16.msra.mxu0 %v218
    %232 = vmatprep.subr.bf16.mxu0 0
    %233 = vmatpush1.bf16.msra.mxu0 %v217
    %234 = vmatprep.subr.bf16.mxu0 0
    %235 = vmatpush1.bf16.msra.mxu0 %v216
    %236 = vmatprep.subr.bf16.mxu0 0
    %237 = vmatpush1.bf16.msra.mxu0 %v215
    %238 = vmatprep.subr.bf16.mxu0 0
    %239 = vmatpush1.bf16.msra.mxu0 %v214
    %240 = vmatprep.subr.bf16.mxu0 0
    %241 = vmatpush1.bf16.msra.mxu0 %v213
    %242 = vmatprep.subr.bf16.mxu0 0
    %243 = vmatpush1.bf16.msra.mxu0 %v212
    %244 = vmatprep.subr.bf16.mxu0 0
    %245 = vmatpush2.bf16.msra.mxu0 0
    %246 = vmatprep.subr.bf16.mxu0 0
    %247 = vmatpush2.bf16.msra.mxu0 0
    %248 = vmatprep.subr.bf16.mxu0 0
    %249 = vmatpush2.bf16.msra.mxu0 0
    %250 = vmatprep.subr.bf16.mxu0 0
    %251 = vmatpush2.bf16.msra.mxu0 0
    %252 = vmatprep.subr.bf16.mxu0 0
    %253 = vmatpush2.bf16.msra.mxu0 0
    %254 = vmatprep.subr.bf16.mxu0 0
    %255 = vmatpush2.bf16.msra.mxu0 0
    %256 = vmatprep.subr.bf16.mxu0 0
    %257 = vmatpush2.bf16.msra.mxu0 0
    %258 = vmatprep.subr.bf16.mxu0 0
    %259 = vmatpush2.bf16.msra.mxu0 0
    %260 = vmatprep.mubr.bf16.mxu0 0
    %261 = vmatmul.mubr.bf16.gmra.mxu0 %v59
    %v262 = vpop.f32.mrf.mxu0
    %v263 = vadd.f32 %v175, %v262
    %v264 = vpop.f32.mrf.mxu0
    %v265 = vpop.f32.mrf.mxu0
    %v266 = vpop.f32.mrf.mxu0
    %267 = vdwg.mxu0
    %268 = vst [vmem:[#allocation7] sm:$0xff] %v263
    // Predicated region
    $region22: #{tpu_custom_call.1} parent=1 // pred_check
      _
    $region23: #{tpu_custom_call.1} parent=1 // pred_check_branch
      %270 = sbr.rel (0) target = $region25
    $region24: #{tpu_custom_call.1} parent=1 // pred_region
      %s272 = ssub.s32 128, 128
      %273 = vsyncadd [#allocation4], %s272
      %s275 = sshll.u32 [#allocation7], 4
      %s276 = int_to_ptr.vmem [resolvable:$true] %s275
      %278 = dma.vmem_to_hbm [thread:$0]  %s276, 128, %s3, [#allocation4]
    $region25: #{tpu_custom_call.1} parent=1 // pred_fallthru
      _
    // Predicated region
    $region26: #{tpu_custom_call.1} parent=1 // pred_check
      _
    $region27: #{tpu_custom_call.1} parent=1 // pred_check_branch
      %280 = sbr.rel (0) target = $region29
    $region28: #{tpu_custom_call.1} parent=1 // pred_region
      %281 = dma.done [#allocation4], 128
    $region29: #{tpu_custom_call.1} parent=1 // pred_fallthru
      _
    %282 = vsyncpa [#allocation3], 1
    %283 = vsyncpa [#allocation6], 1
    %284 = vsyncpa [#allocation4], 1

</llo_original>
